<compile_context>
chip_gen: v5e
topology: v5e:2x2
jax: 0.10.0
libtpu: 0.0.40
codegen_flags: <defaults>
</compile_context>

<pallas_src>
import functools

import jax
import jax.numpy as jnp
import numpy as np
from jax.experimental import pallas as pl
from jax.experimental.pallas import tpu as pltpu


def _round_up(v: int, m: int) -> int:
    return (v + m - 1) // m * m


def _vmem_budget_bytes() -> int:
    """Per-generation scoped-VMEM budget: physical capacity minus compiler headroom."""
    try:
        cap = int(pltpu.get_tpu_info().vmem_capacity_bytes)
    except Exception:  # emulation / older runtime: assume the v7x floor (64 MiB)
        cap = 64 << 20
    # ~116 MiB usable on v5e/v6e (128 MiB physical), ~52 MiB on v7x (64 MiB physical).
    return max(cap - (12 << 20), 32 << 20)


def _fused_gcn_kernel(x_hbm, w_hbm, adj_ref, o_ref,
                      x_vmem, w_vmem, xw_ref, dma_sem, *, apply_relu):
    # Grid = (core_split, row_tiles_per_core).  On each core's first row tile,
    # pull x and W into single-buffered VMEM scratch (one DMA each) and compute
    # xw = x @ W once; xw stays resident for all row tiles handled by this core.
    @pl.when(pl.program_id(1) == 0)
    def _():
        cx = pltpu.make_async_copy(x_hbm, x_vmem, dma_sem.at[0])
        cw = pltpu.make_async_copy(w_hbm, w_vmem, dma_sem.at[1])
        cx.start()
        cw.start()
        cx.wait()
        cw.wait()
        xw_ref[...] = jnp.dot(
            x_vmem[...], w_vmem[...], preferred_element_type=jnp.float32
        ).astype(xw_ref.dtype)

    out = jnp.dot(adj_ref[...], xw_ref[...], preferred_element_type=jnp.float32)
    if apply_relu:
        out = jnp.maximum(out, 0.0)
    o_ref[...] = out.astype(o_ref.dtype)


def _maybe_pad(a, shape, dtype):
    """Zero-pad `a` up to `shape` and cast to `dtype` (no-op if already matching)."""
    if a.shape == tuple(shape) and a.dtype == jnp.dtype(dtype):
        return a
    out = jnp.zeros(shape, dtype)
    return out.at[tuple(slice(0, s) for s in a.shape)].set(a.astype(dtype))


def graph_conv_sparse_forward(x, adj, weight, *, apply_relu=True,
                              compute_dtype=None, adj_dtype=None, tm=None):
    """out = activation(adj @ (x @ weight)), fused in a single Pallas kernel.

    compute_dtype: dtype for x / W / xw fed to the MXU (bf16 on v5e/v6e for
      throughput).  Accumulation is always f32; output keeps x.dtype.
    adj_dtype: dtype for the streamed adjacency (bf16 halves the dominant HBM
      stream).  Defaults to compute_dtype.
    """
    M, K = x.shape
    K2, N = weight.shape
    assert K == K2 and adj.shape == (M, M)

    out_dtype = x.dtype
    cdt = jnp.dtype(compute_dtype) if compute_dtype is not None else jnp.dtype(x.dtype)
    adt = jnp.dtype(adj_dtype) if adj_dtype is not None else cdt

    # Lane-dense padding on every axis that maps to lanes / MXU contraction.
    Kp = _round_up(K, 128)
    Np = _round_up(N, 128)
    Mp0 = _round_up(M, 128)

    isz = cdt.itemsize
    asz = adt.itemsize
    osz = jnp.dtype(out_dtype).itemsize

    def vmem_need(tm_, mp_):
        return (mp_ * Kp * isz            # x, single-buffered scratch
                + Kp * Np * isz           # W, single-buffered scratch
                + mp_ * Np * isz          # xw, resident across row tiles
                + 2 * tm_ * mp_ * asz     # adj row tile, double-buffered stream
                + 2 * tm_ * Np * osz)     # output tile, double-buffered

    budget = _vmem_budget_bytes()

    if tm is None:
        tm, Mp = 128, Mp0
        for cand in (Mp0, 512, 256, 128):       # biggest 128-multiple tile that fits
            if cand > Mp0 or cand % 128:
                continue
            mp_c = _round_up(Mp0, cand)
            if vmem_need(cand, mp_c) <= budget:
                tm, Mp = cand, mp_c
                break
    else:
        tm = _round_up(tm, 128)
        Mp = _round_up(Mp0, tm)

    need = vmem_need(tm, Mp)
    vmem_limit = int(max(need + (2 << 20), 32 << 20))
    if need + (2 << 20) <= budget:
        vmem_limit = min(vmem_limit, budget)    # cap only when there is slack

    x_p = _maybe_pad(x, (Mp, Kp), cdt)
    w_p = _maybe_pad(weight, (Kp, Np), cdt)
    adj_p = _maybe_pad(adj, (Mp, Mp), adt)

    n_tiles = Mp // tm
    # Split row tiles across two TensorCores (v7x) when possible; on 1-TC chips the
    # extra x@W recompute on the "second core" is negligible vs. the adj stream.
    ncore = 2 if (n_tiles >= 2 and n_tiles % 2 == 0) else 1
    rpc = n_tiles // ncore

    kernel = functools.partial(_fused_gcn_kernel, apply_relu=apply_relu)

    out_p = pl.pallas_call(
        kernel,
        out_shape=jax.ShapeDtypeStruct((Mp, Np), out_dtype),
        grid_spec=pltpu.PrefetchScalarGridSpec(
            num_scalar_prefetch=0,
            grid=(ncore, rpc),
            in_specs=[
                pl.BlockSpec(memory_space=pl.ANY),     # x: raw HBM, DMA'd once
                pl.BlockSpec(memory_space=pl.ANY),     # W: raw HBM, DMA'd once
                # adj: streamed row tiles (only double-buffered operand; a deeper
                # pipeline_mode could be swept here once profiles show exposed DMA).
                pl.BlockSpec((tm, Mp), lambda c, j, rpc=rpc: (c * rpc + j, 0)),
            ],
            out_specs=pl.BlockSpec((tm, Np), lambda c, j, rpc=rpc: (c * rpc + j, 0)),
            scratch_shapes=[
                pltpu.VMEM((Mp, Kp), cdt),     # x, single copy
                pltpu.VMEM((Kp, Np), cdt),     # W, single copy
                pltpu.VMEM((Mp, Np), cdt),     # xw, carried across row tiles
                pltpu.SemaphoreType.DMA((2,)),
            ],
        ),
        compiler_params=pltpu.CompilerParams(
            dimension_semantics=("parallel", "arbitrary"),
            vmem_limit_bytes=vmem_limit,
        ),
    )(x_p, w_p, adj_p)

    return out_p[:M, :N]


def glorot_init(key, input_dim, output_dim):
    init_range = np.sqrt(6.0 / (input_dim + output_dim))
    return jax.random.uniform(
        key, (input_dim, output_dim), dtype=jnp.float32,
        minval=-init_range, maxval=init_range,
    )


def _reference(x, adj, weight):
    return jnp.maximum(adj @ (x @ weight), 0.0)


if __name__ == "__main__":
    num_nodes, input_dim, output_dim = 128, 64, 32

    key = jax.random.PRNGKey(0)
    k_x, k_w, k_adj = jax.random.split(key, 3)

    # Node features.
    x = jax.random.normal(k_x, (num_nodes, input_dim), dtype=jnp.float32)

    # Deterministic "normalized adjacency": random symmetric graph + self-loops,
    # row-normalized, stored dense (torch.mm on a dense adj in the reference).
    a = (jax.random.uniform(k_adj, (num_nodes, num_nodes)) < 0.1).astype(jnp.float32)
    a = jnp.maximum(a, a.T) + jnp.eye(num_nodes, dtype=jnp.float32)
    adj = a / jnp.sum(a, axis=1, keepdims=True)

    # Glorot-initialized weight (same distribution as the PyTorch module's __init__).
    weight = glorot_init(k_w, input_dim, output_dim)

    ref = np.asarray(_reference(x, adj, weight))

    # 1) Default f32 path: strict numeric check against the reference.
    out = jax.block_until_ready(graph_conv_sparse_forward(x, adj, weight))
    np.testing.assert_allclose(np.asarray(out), ref, rtol=1e-5, atol=1e-5)

    # 2) bf16 adjacency stream (halves the dominant HBM traffic), f32 x@W / xw.
    out_badj = jax.block_until_ready(
        graph_conv_sparse_forward(x, adj, weight, adj_dtype=jnp.bfloat16))
    np.testing.assert_allclose(np.asarray(out_badj), ref, rtol=2e-2, atol=2e-2)

    # 3) Full bf16 MXU-input path (v5e/v6e throughput option), f32 accumulation.
    out_bf16 = jax.block_until_ready(
        graph_conv_sparse_forward(x, adj, weight, compute_dtype=jnp.bfloat16))
    np.testing.assert_allclose(np.asarray(out_bf16), ref, rtol=5e-2, atol=5e-2)

    print("KERNEL_OK")
</pallas_src>

<mosaic_0001>
module attributes {stable_mosaic.version = 11 : i64} {
  func.func @_fused_gcn_kernel(%arg0: i32, %arg1: i32, %arg2: memref<128x128xf32, #tpu.memory_space<any>>, %arg3: memref<128x128xf32, #tpu.memory_space<any>>, %arg4: memref<128x128xf32, #tpu.memory_space<vmem>>, %arg5: memref<128x128xf32, #tpu.memory_space<vmem>>, %arg6: memref<128x128xf32, #tpu.memory_space<vmem>>, %arg7: memref<128x128xf32, #tpu.memory_space<vmem>>, %arg8: memref<128x128xf32, #tpu.memory_space<vmem>>, %arg9: memref<2x!tpu.dma_semaphore, #tpu.memory_space<semaphore_mem>>) attributes {dimension_semantics = [#tpu.dimension_semantics<parallel>, #tpu.dimension_semantics<arbitrary>], iteration_bounds = array<i64: 1, 1>, scalar_prefetch = 0 : i64, scratch_operands = 4 : i64, tpu.core_type = #tpu.core_type<tc>, window_params = [{}, {}, {transform_indices = @transform_2, window_bounds = array<i64: 128, 128>}, {transform_indices = @transform_3, window_bounds = array<i64: 128, 128>}]} {
    %c0_i32 = arith.constant 0 : i32
    %0 = arith.cmpi eq, %arg1, %c0_i32 : i32
    %1 = arith.extui %0 : i1 to i32
    %c0_i32_0 = arith.constant 0 : i32
    %2 = arith.cmpi ne, %1, %c0_i32_0 : i32
    scf.if %2 {
      %c0_i32_7 = arith.constant 0 : i32
      %9 = tpu.memref_slice %arg9[%c0_i32_7] : memref<2x!tpu.dma_semaphore, #tpu.memory_space<semaphore_mem>> -> memref<1x!tpu.dma_semaphore, #tpu.memory_space<semaphore_mem>>
      %10 = tpu.memref_squeeze %9 : memref<1x!tpu.dma_semaphore, #tpu.memory_space<semaphore_mem>> -> memref<!tpu.dma_semaphore, #tpu.memory_space<semaphore_mem>>
      tpu.enqueue_dma source(%arg2 : memref<128x128xf32, #tpu.memory_space<any>>) target(%arg6 : memref<128x128xf32, #tpu.memory_space<vmem>>) target_semaphore(%10 : memref<!tpu.dma_semaphore, #tpu.memory_space<semaphore_mem>>)
      %c1_i32 = arith.constant 1 : i32
      %11 = tpu.memref_slice %arg9[%c1_i32] : memref<2x!tpu.dma_semaphore, #tpu.memory_space<semaphore_mem>> -> memref<1x!tpu.dma_semaphore, #tpu.memory_space<semaphore_mem>>
      %12 = tpu.memref_squeeze %11 : memref<1x!tpu.dma_semaphore, #tpu.memory_space<semaphore_mem>> -> memref<!tpu.dma_semaphore, #tpu.memory_space<semaphore_mem>>
      tpu.enqueue_dma source(%arg3 : memref<128x128xf32, #tpu.memory_space<any>>) target(%arg7 : memref<128x128xf32, #tpu.memory_space<vmem>>) target_semaphore(%12 : memref<!tpu.dma_semaphore, #tpu.memory_space<semaphore_mem>>)
      %c0_i32_8 = arith.constant 0 : i32
      %13 = tpu.memref_slice %arg9[%c0_i32_8] : memref<2x!tpu.dma_semaphore, #tpu.memory_space<semaphore_mem>> -> memref<1x!tpu.dma_semaphore, #tpu.memory_space<semaphore_mem>>
      %14 = tpu.memref_squeeze %13 : memref<1x!tpu.dma_semaphore, #tpu.memory_space<semaphore_mem>> -> memref<!tpu.dma_semaphore, #tpu.memory_space<semaphore_mem>>
      tpu.wait_dma2 semaphore(%14 : memref<!tpu.dma_semaphore, #tpu.memory_space<semaphore_mem>>) src(%arg2 : memref<128x128xf32, #tpu.memory_space<any>>) dst(%arg6 : memref<128x128xf32, #tpu.memory_space<vmem>>)
      %c1_i32_9 = arith.constant 1 : i32
      %15 = tpu.memref_slice %arg9[%c1_i32_9] : memref<2x!tpu.dma_semaphore, #tpu.memory_space<semaphore_mem>> -> memref<1x!tpu.dma_semaphore, #tpu.memory_space<semaphore_mem>>
      %16 = tpu.memref_squeeze %15 : memref<1x!tpu.dma_semaphore, #tpu.memory_space<semaphore_mem>> -> memref<!tpu.dma_semaphore, #tpu.memory_space<semaphore_mem>>
      tpu.wait_dma2 semaphore(%16 : memref<!tpu.dma_semaphore, #tpu.memory_space<semaphore_mem>>) src(%arg3 : memref<128x128xf32, #tpu.memory_space<any>>) dst(%arg7 : memref<128x128xf32, #tpu.memory_space<vmem>>)
      %c0_10 = arith.constant 0 : index
      %c0_11 = arith.constant 0 : index
      %17 = vector.load %arg6[%c0_10, %c0_11] : memref<128x128xf32, #tpu.memory_space<vmem>>, vector<128x128xf32>
      %c0_12 = arith.constant 0 : index
      %c0_13 = arith.constant 0 : index
      %18 = vector.load %arg7[%c0_12, %c0_13] : memref<128x128xf32, #tpu.memory_space<vmem>>, vector<128x128xf32>
      %cst_14 = arith.constant dense<0.000000e+00> : vector<128x128xf32>
      %19 = tpu.matmul %17, %18, %cst_14 {dimension_numbers = #tpu.dot_dimension_numbers<[1], [0], [0], [1], [0, 0, 1, 1], [], []>} : vector<128x128xf32>, vector<128x128xf32>, vector<128x128xf32> -> vector<128x128xf32>
      %c0_15 = arith.constant 0 : index
      %c0_16 = arith.constant 0 : index
      %20 = vector.load %arg8[%c0_15, %c0_16] : memref<128x128xf32, #tpu.memory_space<vmem>>, vector<128x128xf32>
      tpu.vector_store %arg8[%c0_15, %c0_16], %19 {strides = array<i32>} : memref<128x128xf32, #tpu.memory_space<vmem>>, vector<128x128xf32>,
    } else {
    }
    %c0 = arith.constant 0 : index
    %c0_1 = arith.constant 0 : index
    %3 = vector.load %arg4[%c0, %c0_1] : memref<128x128xf32, #tpu.memory_space<vmem>>, vector<128x128xf32>
    %c0_2 = arith.constant 0 : index
    %c0_3 = arith.constant 0 : index
    %4 = vector.load %arg8[%c0_2, %c0_3] : memref<128x128xf32, #tpu.memory_space<vmem>>, vector<128x128xf32>
    %cst = arith.constant dense<0.000000e+00> : vector<128x128xf32>
    %5 = tpu.matmul %3, %4, %cst {dimension_numbers = #tpu.dot_dimension_numbers<[1], [0], [0], [1], [0, 0, 1, 1], [], []>} : vector<128x128xf32>, vector<128x128xf32>, vector<128x128xf32> -> vector<128x128xf32>
    %cst_4 = arith.constant 0.000000e+00 : f32
    %6 = vector.broadcast %cst_4 : f32 to vector<128x128xf32>
    %7 = arith.maximumf %5, %6 : vector<128x128xf32>
    %c0_5 = arith.constant 0 : index
    %c0_6 = arith.constant 0 : index
    %8 = vector.load %arg5[%c0_5, %c0_6] : memref<128x128xf32, #tpu.memory_space<vmem>>, vector<128x128xf32>
    tpu.vector_store %arg5[%c0_5, %c0_6], %7 {strides = array<i32>} : memref<128x128xf32, #tpu.memory_space<vmem>>, vector<128x128xf32>,
    return
  }
  func.func @transform_2(%arg0: i32, %arg1: i32) -> (i32, i32) {
    %c1_i32 = arith.constant 1 : i32
    %0 = arith.muli %arg0, %c1_i32 : i32
    %1 = arith.addi %0, %arg1 : i32
    %c0_i32 = arith.constant 0 : i32
    %c0_i32_0 = arith.constant 0 : i32
    return %1, %c0_i32 : i32, i32
  }
  func.func @transform_3(%arg0: i32, %arg1: i32) -> (i32, i32) {
    %c1_i32 = arith.constant 1 : i32
    %0 = arith.muli %arg0, %c1_i32 : i32
    %1 = arith.addi %0, %arg1 : i32
    %c0_i32 = arith.constant 0 : i32
    %c0_i32_0 = arith.constant 0 : i32
    return %1, %c0_i32 : i32, i32
  }
}

</mosaic_0001>

<llo_original>
// kernel: tpu_custom_call.1
$region0: #{tpu_custom_call.1}
  #allocation0 [shape = 'u32[]', space=smem, size = 0x4, offset = 0x4, fixed_abs, tag = 'smem constant byte address 0x4 - core index']
  #allocation1 [shape = 'u32[72,128]{1,0:T(1,128)}', space=vmem, size = 0x9000, scoped, tag = 'internal scratch']
  #allocation2 [shape = 'f32[128,128]{1,0:T(8,128)}', space=vmem, size = 0x10000, scoped, tag = 'scratch operand']
  #allocation3 [shape = 'f32[128,128]{1,0:T(8,128)}', space=vmem, size = 0x10000, scoped, tag = 'scratch operand']
  #allocation4 [shape = 'f32[128,128]{1,0:T(8,128)}', space=vmem, size = 0x10000, scoped, tag = 'scratch operand']
  #allocation5 [shape = 's32[2]{0}', space=sflag, size = 0x8, scoped, tag = 'scratch operand']
  #allocation10 [shape = 's32[]', space=sflag, size = 0x4, offset = 0, fixed_abs, tag = 'sflag constant byte address 0x0 - dummy sync flag']
  #allocation11 [shape = 's32[]', space=sflag, size = 0x4, offset = 0, fixed_abs, tag = 'sflag constant byte address 0x0 - dummy sync flag']
  #allocation12 [shape = 'u32[]', space=smem, size = 0x4, offset = 0x44, fixed_abs, tag = 'smem constant byte address 0x44 - assertion arg 0']
  #allocation13 [shape = 'u32[]', space=smem, size = 0x4, offset = 0x48, fixed_abs, tag = 'smem constant byte address 0x48 - assertion arg 1']
  #allocation14 [shape = 's32[]', space=sflag, size = 0x4, offset = 0, fixed_abs, tag = 'sflag constant byte address 0x0 - dummy sync flag']
  #allocation15 [shape = 's32[]', space=sflag, size = 0x4, offset = 0, fixed_abs, tag = 'sflag constant byte address 0x0 - dummy sync flag']
  %s0 = inlined_call_operand.hbm [shape: f32[128,128], index: 0, kind: input, shape index: {}]
  %s1 = inlined_call_operand.hbm [shape: f32[128,128], index: 1, kind: input, shape index: {}]
  %s2 = inlined_call_operand.hbm [shape: f32[128,128], index: 2, kind: input, shape index: {}]
  %s3 = inlined_call_operand.hbm [shape: f32[128,128], index: 3, kind: output, shape index: {}]
  %s4 = sld [smem:[#allocation0]]
  $region30: #{tpu_custom_call.1} parent=0
    _
  %s6 = ssub.s32 1, %s4
  %s7 = scalar_select 0, %s6, %s4
  $region1: #{tpu_custom_call.1} parent=0
    #allocation6 [shape = 'u8[65536]{0}', space=vmem, size = 0x10000, scoped, tag = 'input window, operand 2, single buffered']
    #allocation7 [shape = 's32[1]{0}', space=sflag, size = 0x4, scoped, tag = 'scoped memory for tpu_custom_call.1']
    #allocation8 [shape = 's32[1]{0}', space=sflag, size = 0x4, scoped, tag = 'scoped memory for tpu_custom_call.1']
    #allocation9 [shape = 'u8[65536]{0}', space=vmem, size = 0x10000, scoped, tag = 'output window, operand 0, single buffered']
    %8 = vsyncpa [#allocation7], 0
    %9 = vsyncpa [#allocation8], 0
    // Predicated region
    $region2: #{tpu_custom_call.1} parent=1 // pred_check
      _
    $region3: #{tpu_custom_call.1} parent=1 // pred_check_branch
      %11 = sbr.rel (0) target = $region5
    $region4: #{tpu_custom_call.1} parent=1 // pred_region
      %s12 = sadd.s32 0, 0
      %s13 = smul.u32 16, %s12
      %15 = vsyncadd [#allocation7], 0
      %s16 = smul.addr %s13, 8
      %s17 = scalar_lea.hbm %s2, %s16
      %s18 = sshll.u32 %s17, 4
      %s19 = int_to_ptr.hbm [resolvable:$true] %s18
      %s20 = sshll.u32 [#allocation6], 4
      %s21 = int_to_ptr.vmem [resolvable:$true] %s20
      %26 = dma.hbm_to_vmem [thread:$0]  %s19, 2048, %s21, [#allocation7], 128, 128, 8
    $region5: #{tpu_custom_call.1} parent=1 // pred_fallthru
      _
    // Predicated region
    $region6: #{tpu_custom_call.1} parent=1 // pred_check
      _
    $region7: #{tpu_custom_call.1} parent=1 // pred_check_branch
      %28 = sbr.rel (0) target = $region9
    $region8: #{tpu_custom_call.1} parent=1 // pred_region
      %30 = dma.done [#allocation7], 2048
    $region9: #{tpu_custom_call.1} parent=1 // pred_fallthru
      _
    %s31 = sadd.s32 0, 0
    %s32 = smul.u32 16, %s31
    %s33 = sadd.s32 0, 0
    %s34 = smul.u32 16, %s33
    %p35 = scmp.eq.s32.totalorder 0, 0
    // Predicated region
    $region10: #{tpu_custom_call.1} parent=1 // pred_check
      %p36 = pneg %p35
    $region11: #{tpu_custom_call.1} parent=1 // pred_check_branch
      %38 = sbr.rel (%p36) target = $region13
    $region12: #{tpu_custom_call.1} parent=1 // pred_region
      // Predicated region
      $region14: #{tpu_custom_call.1} parent=12 // pred_check
        _
      $region15: #{tpu_custom_call.1} parent=12 // pred_check_branch
        %40 = sbr.rel target = $region17
      $region16: #{tpu_custom_call.1} parent=12 // pred_region
        %41 = sst [smem:[#allocation12]] [#allocation11]
        %42 = sst [smem:[#allocation13]] [#allocation10]
      $region17: #{tpu_custom_call.1} parent=12 // pred_fallthru
        _
      %44 = shalt.err (0)
      %s46 = sshll.u32 %s0, 4
      %s47 = int_to_ptr.hbm [resolvable:$true] %s46
      %s48 = sshll.u32 [#allocation2], 4
      %s49 = int_to_ptr.vmem [resolvable:$true] %s48
      %51 = dma.hbm_to_vmem [thread:$0]  %s47, 2048, %s49, [#allocation5]
      %s52 = scalar_lea.sflag [#allocation5], 1
      // Predicated region
      $region18: #{tpu_custom_call.1} parent=12 // pred_check
        _
      $region19: #{tpu_custom_call.1} parent=12 // pred_check_branch
        %54 = sbr.rel target = $region21
      $region20: #{tpu_custom_call.1} parent=12 // pred_region
        %55 = sst [smem:[#allocation12]] [#allocation15]
        %56 = sst [smem:[#allocation13]] [#allocation14]
      $region21: #{tpu_custom_call.1} parent=12 // pred_fallthru
        _
      %58 = shalt.err (0)
      %s60 = sshll.u32 %s1, 4
      %s61 = int_to_ptr.hbm [resolvable:$true] %s60
      %s62 = sshll.u32 [#allocation3], 4
      %s63 = int_to_ptr.vmem [resolvable:$true] %s62
      %65 = dma.hbm_to_vmem [thread:$0]  %s61, 2048, %s63, %s52
      %s66 = smul.u32 128, 1
      %s67 = sshll.u32 %s66, 4
      %68 = dma.done [#allocation5], %s67
      %s69 = sshll.u32 %s66, 4
      %70 = dma.done %s52, %s69
      %v71 = vld [vmem:[#allocation2] sm:$0xff]
      %v72 = vld [vmem:[#allocation2 + $0x8] sm:$0xff]
      %v73 = vld [vmem:[#allocation2 + $0x10] sm:$0xff]
      %v74 = vld [vmem:[#allocation2 + $0x18] sm:$0xff]
      %v75 = vld [vmem:[#allocation2 + $0x20] sm:$0xff]
      %v76 = vld [vmem:[#allocation2 + $0x28] sm:$0xff]
      %v77 = vld [vmem:[#allocation2 + $0x30] sm:$0xff]
      %v78 = vld [vmem:[#allocation2 + $0x38] sm:$0xff]
      %v79 = vld [vmem:[#allocation2 + $0x40] sm:$0xff]
      %v80 = vld [vmem:[#allocation2 + $0x48] sm:$0xff]
      %v81 = vld [vmem:[#allocation2 + $0x50] sm:$0xff]
      %v82 = vld [vmem:[#allocation2 + $0x58] sm:$0xff]
      %v83 = vld [vmem:[#allocation2 + $0x60] sm:$0xff]
      %v84 = vld [vmem:[#allocation2 + $0x68] sm:$0xff]
      %v85 = vld [vmem:[#allocation2 + $0x70] sm:$0xff]
      %v86 = vld [vmem:[#allocation2 + $0x78] sm:$0xff]
      %v87 = vld [vmem:[#allocation3] sm:$0xff]
      %v88 = vld [vmem:[#allocation3 + $0x8] sm:$0xff]
      %v89 = vld [vmem:[#allocation3 + $0x10] sm:$0xff]
      %v90 = vld [vmem:[#allocation3 + $0x18] sm:$0xff]
      %v91 = vld [vmem:[#allocation3 + $0x20] sm:$0xff]
      %v92 = vld [vmem:[#allocation3 + $0x28] sm:$0xff]
      %v93 = vld [vmem:[#allocation3 + $0x30] sm:$0xff]
      %v94 = vld [vmem:[#allocation3 + $0x38] sm:$0xff]
      %v95 = vld [vmem:[#allocation3 + $0x40] sm:$0xff]
      %v96 = vld [vmem:[#allocation3 + $0x48] sm:$0xff]
      %v97 = vld [vmem:[#allocation3 + $0x50] sm:$0xff]
      %v98 = vld [vmem:[#allocation3 + $0x58] sm:$0xff]
      %v99 = vld [vmem:[#allocation3 + $0x60] sm:$0xff]
      %v100 = vld [vmem:[#allocation3 + $0x68] sm:$0xff]
      %v101 = vld [vmem:[#allocation3 + $0x70] sm:$0xff]
      %v102 = vld [vmem:[#allocation3 + $0x78] sm:$0xff]
      %103 = vmatpush.msra.mxu0 %v102
      %104 = vmatpush.msra.mxu0 %v101
      %105 = vmatpush.msra.mxu0 %v100
      %106 = vmatpush.msra.mxu0 %v99
      %107 = vmatpush.msra.mxu0 %v98
      %108 = vmatpush.msra.mxu0 %v97
      %109 = vmatpush.msra.mxu0 %v96
      %110 = vmatpush.msra.mxu0 %v95
      %111 = vmatpush.msra.mxu0 %v94
      %112 = vmatpush.msra.mxu0 %v93
      %113 = vmatpush.msra.mxu0 %v92
      %114 = vmatpush.msra.mxu0 %v91
      %115 = vmatpush.msra.mxu0 %v90
      %116 = vmatpush.msra.mxu0 %v89
      %117 = vmatpush.msra.mxu0 %v88
      %118 = vmatpush.msra.mxu0 %v87
      %119 = vmatmul.f32.gmra.mxu0 %v71
      %v120 = vpop.f32.mrf.mxu0
      %v121 = vadd.f32 0.0, %v120
      %122 = vmatmul.f32.gmra.mxu0 %v72
      %v123 = vpop.f32.mrf.mxu0
      %v124 = vadd.f32 0.0, %v123
      %125 = vmatmul.f32.gmra.mxu0 %v73
      %v126 = vpop.f32.mrf.mxu0
      %v127 = vadd.f32 0.0, %v126
      %128 = vmatmul.f32.gmra.mxu0 %v74
      %v129 = vpop.f32.mrf.mxu0
      %v130 = vadd.f32 0.0, %v129
      %131 = vmatmul.f32.gmra.mxu0 %v75
      %v132 = vpop.f32.mrf.mxu0
      %v133 = vadd.f32 0.0, %v132
      %134 = vmatmul.f32.gmra.mxu0 %v76
      %v135 = vpop.f32.mrf.mxu0
      %v136 = vadd.f32 0.0, %v135
      %137 = vmatmul.f32.gmra.mxu0 %v77
      %v138 = vpop.f32.mrf.mxu0
      %v139 = vadd.f32 0.0, %v138
      %140 = vmatmul.f32.gmra.mxu0 %v78
      %v141 = vpop.f32.mrf.mxu0
      %v142 = vadd.f32 0.0, %v141
      %143 = vmatmul.f32.gmra.mxu0 %v79
      %v144 = vpop.f32.mrf.mxu0
      %v145 = vadd.f32 0.0, %v144
      %146 = vmatmul.f32.gmra.mxu0 %v80
      %v147 = vpop.f32.mrf.mxu0
      %v148 = vadd.f32 0.0, %v147
      %149 = vmatmul.f32.gmra.mxu0 %v81
      %v150 = vpop.f32.mrf.mxu0
      %v151 = vadd.f32 0.0, %v150
      %152 = vmatmul.f32.gmra.mxu0 %v82
      %v153 = vpop.f32.mrf.mxu0
      %v154 = vadd.f32 0.0, %v153
      %155 = vmatmul.f32.gmra.mxu0 %v83
      %v156 = vpop.f32.mrf.mxu0
      %v157 = vadd.f32 0.0, %v156
      %158 = vmatmul.f32.gmra.mxu0 %v84
      %v159 = vpop.f32.mrf.mxu0
      %v160 = vadd.f32 0.0, %v159
      %161 = vmatmul.f32.gmra.mxu0 %v85
      %v162 = vpop.f32.mrf.mxu0
      %v163 = vadd.f32 0.0, %v162
      %164 = vmatmul.f32.gmra.mxu0 %v86
      %v165 = vpop.f32.mrf.mxu0
      %v166 = vadd.f32 0.0, %v165
      %167 = vdwg.mxu0
      %168 = vst [vmem:[#allocation4] sm:$0xff] %v121
      %169 = vst [vmem:[#allocation4 + $0x8] sm:$0xff] %v124
      %170 = vst [vmem:[#allocation4 + $0x10] sm:$0xff] %v127
      %171 = vst [vmem:[#allocation4 + $0x18] sm:$0xff] %v130
      %172 = vst [vmem:[#allocation4 + $0x20] sm:$0xff] %v133
      %173 = vst [vmem:[#allocation4 + $0x28] sm:$0xff] %v136
      %174 = vst [vmem:[#allocation4 + $0x30] sm:$0xff] %v139
      %175 = vst [vmem:[#allocation4 + $0x38] sm:$0xff] %v142
      %176 = vst [vmem:[#allocation4 + $0x40] sm:$0xff] %v145
      %177 = vst [vmem:[#allocation4 + $0x48] sm:$0xff] %v148
      %178 = vst [vmem:[#allocation4 + $0x50] sm:$0xff] %v151
      %179 = vst [vmem:[#allocation4 + $0x58] sm:$0xff] %v154
      %180 = vst [vmem:[#allocation4 + $0x60] sm:$0xff] %v157
      %181 = vst [vmem:[#allocation4 + $0x68] sm:$0xff] %v160
      %182 = vst [vmem:[#allocation4 + $0x70] sm:$0xff] %v163
      %183 = vst [vmem:[#allocation4 + $0x78] sm:$0xff] %v166
    $region13: #{tpu_custom_call.1} parent=1 // pred_fallthru
      _
    %v184 = vld [vmem:[#allocation6] sm:$0xff]
    %v185 = vld [vmem:[#allocation6 + $0x8] sm:$0xff]
    %v186 = vld [vmem:[#allocation6 + $0x10] sm:$0xff]
    %v187 = vld [vmem:[#allocation6 + $0x18] sm:$0xff]
    %v188 = vld [vmem:[#allocation6 + $0x20] sm:$0xff]
    %v189 = vld [vmem:[#allocation6 + $0x28] sm:$0xff]
    %v190 = vld [vmem:[#allocation6 + $0x30] sm:$0xff]
    %v191 = vld [vmem:[#allocation6 + $0x38] sm:$0xff]
    %v192 = vld [vmem:[#allocation6 + $0x40] sm:$0xff]
    %v193 = vld [vmem:[#allocation6 + $0x48] sm:$0xff]
    %v194 = vld [vmem:[#allocation6 + $0x50] sm:$0xff]
    %v195 = vld [vmem:[#allocation6 + $0x58] sm:$0xff]
    %v196 = vld [vmem:[#allocation6 + $0x60] sm:$0xff]
    %v197 = vld [vmem:[#allocation6 + $0x68] sm:$0xff]
    %v198 = vld [vmem:[#allocation6 + $0x70] sm:$0xff]
    %v199 = vld [vmem:[#allocation6 + $0x78] sm:$0xff]
    %v200 = vld [vmem:[#allocation4] sm:$0xff]
    %v201 = vld [vmem:[#allocation4 + $0x8] sm:$0xff]
    %v202 = vld [vmem:[#allocation4 + $0x10] sm:$0xff]
    %v203 = vld [vmem:[#allocation4 + $0x18] sm:$0xff]
    %v204 = vld [vmem:[#allocation4 + $0x20] sm:$0xff]
    %v205 = vld [vmem:[#allocation4 + $0x28] sm:$0xff]
    %v206 = vld [vmem:[#allocation4 + $0x30] sm:$0xff]
    %v207 = vld [vmem:[#allocation4 + $0x38] sm:$0xff]
    %v208 = vld [vmem:[#allocation4 + $0x40] sm:$0xff]
    %v209 = vld [vmem:[#allocation4 + $0x48] sm:$0xff]
    %v210 = vld [vmem:[#allocation4 + $0x50] sm:$0xff]
    %v211 = vld [vmem:[#allocation4 + $0x58] sm:$0xff]
    %v212 = vld [vmem:[#allocation4 + $0x60] sm:$0xff]
    %v213 = vld [vmem:[#allocation4 + $0x68] sm:$0xff]
    %v214 = vld [vmem:[#allocation4 + $0x70] sm:$0xff]
    %v215 = vld [vmem:[#allocation4 + $0x78] sm:$0xff]
    %216 = vmatpush.msra.mxu0 %v215
    %217 = vmatpush.msra.mxu0 %v214
    %218 = vmatpush.msra.mxu0 %v213
    %219 = vmatpush.msra.mxu0 %v212
    %220 = vmatpush.msra.mxu0 %v211
    %221 = vmatpush.msra.mxu0 %v210
    %222 = vmatpush.msra.mxu0 %v209
    %223 = vmatpush.msra.mxu0 %v208
    %224 = vmatpush.msra.mxu0 %v207
    %225 = vmatpush.msra.mxu0 %v206
    %226 = vmatpush.msra.mxu0 %v205
    %227 = vmatpush.msra.mxu0 %v204
    %228 = vmatpush.msra.mxu0 %v203
    %229 = vmatpush.msra.mxu0 %v202
    %230 = vmatpush.msra.mxu0 %v201
    %231 = vmatpush.msra.mxu0 %v200
    %232 = vmatmul.f32.gmra.mxu0 %v184
    %v233 = vpop.f32.mrf.mxu0
    %v234 = vadd.f32 0.0, %v233
    %235 = vmatmul.f32.gmra.mxu0 %v185
    %v236 = vpop.f32.mrf.mxu0
    %v237 = vadd.f32 0.0, %v236
    %238 = vmatmul.f32.gmra.mxu0 %v186
    %v239 = vpop.f32.mrf.mxu0
    %v240 = vadd.f32 0.0, %v239
    %241 = vmatmul.f32.gmra.mxu0 %v187
    %v242 = vpop.f32.mrf.mxu0
    %v243 = vadd.f32 0.0, %v242
    %244 = vmatmul.f32.gmra.mxu0 %v188
    %v245 = vpop.f32.mrf.mxu0
    %v246 = vadd.f32 0.0, %v245
    %247 = vmatmul.f32.gmra.mxu0 %v189
    %v248 = vpop.f32.mrf.mxu0
    %v249 = vadd.f32 0.0, %v248
    %250 = vmatmul.f32.gmra.mxu0 %v190
    %v251 = vpop.f32.mrf.mxu0
    %v252 = vadd.f32 0.0, %v251
    %253 = vmatmul.f32.gmra.mxu0 %v191
    %v254 = vpop.f32.mrf.mxu0
    %v255 = vadd.f32 0.0, %v254
    %256 = vmatmul.f32.gmra.mxu0 %v192
    %v257 = vpop.f32.mrf.mxu0
    %v258 = vadd.f32 0.0, %v257
    %259 = vmatmul.f32.gmra.mxu0 %v193
    %v260 = vpop.f32.mrf.mxu0
    %v261 = vadd.f32 0.0, %v260
    %262 = vmatmul.f32.gmra.mxu0 %v194
    %v263 = vpop.f32.mrf.mxu0
    %v264 = vadd.f32 0.0, %v263
    %265 = vmatmul.f32.gmra.mxu0 %v195
    %v266 = vpop.f32.mrf.mxu0
    %v267 = vadd.f32 0.0, %v266
    %268 = vmatmul.f32.gmra.mxu0 %v196
    %v269 = vpop.f32.mrf.mxu0
    %v270 = vadd.f32 0.0, %v269
    %271 = vmatmul.f32.gmra.mxu0 %v197
    %v272 = vpop.f32.mrf.mxu0
    %v273 = vadd.f32 0.0, %v272
    %274 = vmatmul.f32.gmra.mxu0 %v198
    %v275 = vpop.f32.mrf.mxu0
    %v276 = vadd.f32 0.0, %v275
    %277 = vmatmul.f32.gmra.mxu0 %v199
    %v278 = vpop.f32.mrf.mxu0
    %v279 = vadd.f32 0.0, %v278
    %280 = vdwg.mxu0
    %v281 = vmax.f32 %v234, 0.0
    %v282 = vmax.f32 %v237, 0.0
    %v283 = vmax.f32 %v240, 0.0
    %v284 = vmax.f32 %v243, 0.0
    %v285 = vmax.f32 %v246, 0.0
    %v286 = vmax.f32 %v249, 0.0
    %v287 = vmax.f32 %v252, 0.0
    %v288 = vmax.f32 %v255, 0.0
    %v289 = vmax.f32 %v258, 0.0
    %v290 = vmax.f32 %v261, 0.0
    %v291 = vmax.f32 %v264, 0.0
    %v292 = vmax.f32 %v267, 0.0
    %v293 = vmax.f32 %v270, 0.0
    %v294 = vmax.f32 %v273, 0.0
    %v295 = vmax.f32 %v276, 0.0
    %v296 = vmax.f32 %v279, 0.0
    %297 = vst [vmem:[#allocation9] sm:$0xff] %v281
    %298 = vst [vmem:[#allocation9 + $0x8] sm:$0xff] %v282
    %299 = vst [vmem:[#allocation9 + $0x10] sm:$0xff] %v283
    %300 = vst [vmem:[#allocation9 + $0x18] sm:$0xff] %v284
    %301 = vst [vmem:[#allocation9 + $0x20] sm:$0xff] %v285
    %302 = vst [vmem:[#allocation9 + $0x28] sm:$0xff] %v286
    %303 = vst [vmem:[#allocation9 + $0x30] sm:$0xff] %v287
    %304 = vst [vmem:[#allocation9 + $0x38] sm:$0xff] %v288
    %305 = vst [vmem:[#allocation9 + $0x40] sm:$0xff] %v289
    %306 = vst [vmem:[#allocation9 + $0x48] sm:$0xff] %v290
    %307 = vst [vmem:[#allocation9 + $0x50] sm:$0xff] %v291
    %308 = vst [vmem:[#allocation9 + $0x58] sm:$0xff] %v292
    %309 = vst [vmem:[#allocation9 + $0x60] sm:$0xff] %v293
    %310 = vst [vmem:[#allocation9 + $0x68] sm:$0xff] %v294
    %311 = vst [vmem:[#allocation9 + $0x70] sm:$0xff] %v295
    %312 = vst [vmem:[#allocation9 + $0x78] sm:$0xff] %v296
    // Predicated region
    $region22: #{tpu_custom_call.1} parent=1 // pred_check
      _
    $region23: #{tpu_custom_call.1} parent=1 // pred_check_branch
      %314 = sbr.rel (0) target = $region25
    $region24: #{tpu_custom_call.1} parent=1 // pred_region
      %s315 = sadd.s32 0, 0
      %s316 = smul.u32 16, %s315
      %318 = vsyncadd [#allocation8], 0
      %s319 = smul.addr %s316, 8
      %s320 = scalar_lea.hbm %s3, %s319
      %s321 = sshll.u32 [#allocation9], 4
      %s322 = int_to_ptr.vmem [resolvable:$true] %s321
      %s323 = sshll.u32 %s320, 4
      %s324 = int_to_ptr.hbm [resolvable:$true] %s323
      %329 = dma.vmem_to_hbm [thread:$0]  %s322, 2048, %s324, [#allocation8], 128, 128, 8
    $region25: #{tpu_custom_call.1} parent=1 // pred_fallthru
      _
    // Predicated region
    $region26: #{tpu_custom_call.1} parent=1 // pred_check
      _
    $region27: #{tpu_custom_call.1} parent=1 // pred_check_branch
      %331 = sbr.rel (0) target = $region29
    $region28: #{tpu_custom_call.1} parent=1 // pred_region
      %333 = dma.done [#allocation8], 2048
    $region29: #{tpu_custom_call.1} parent=1 // pred_fallthru
      _
    %334 = vsyncpa [#allocation7], 1
    %335 = vsyncpa [#allocation8], 1
  %336 = vsyncmov [#allocation5]
  %s337 = vpop.sfrf %336
  %p338 = scmp.eq.s32.totalorder %s337, 0
  %p339 = pneg %p338
  %341 = shalt.err (%p339)
  %s342 = scalar_lea.sflag [#allocation5], 1
  %343 = vsyncmov %s342
  %s344 = vpop.sfrf %343
  %p345 = scmp.eq.s32.totalorder %s344, 0
  %p346 = pneg %p345
  %348 = shalt.err (%p346)

</llo_original>
